<compile_context>
chip_gen: v7x
topology: tpu7x:2x2x1
jax: 0.10.0
libtpu: 0.0.40
codegen_flags: <defaults>
</compile_context>

<pallas_src>
import jax
import jax.numpy as jnp
from jax.experimental import pallas as pl
from jax.experimental.pallas import tpu as pltpu


def _audio_cls_kernel(x_ref, w1_ref, b1_ref, pool_ref, w2_ref, b2_ref, o_ref):
    bt, f_dim, t_pad = x_ref.shape
    h_pad = w1_ref.shape[1]
    cdt = w1_ref.dtype  # frame-matmul operand dtype (bf16 default, f32 parity)

    # ---- frame-level Linear: one MXU matmul over all bt*T frames ------------
    if bt == 1:
        # Single 2-D layout swap of the VMEM-resident [F, T] slab (XLU), then a
        # plain [T, F] x [F, H] MXU matmul.  No per-batch loop, no concat.
        frames = x_ref[0].astype(cdt).T                       # [T, F]
    else:
        # One fused layout op for the whole block (no per-batch transposes or
        # concat copies); the (bt, T) -> bt*T merge is free since T % 8 == 0.
        frames = jnp.swapaxes(x_ref[...].astype(cdt), 1, 2).reshape(
            bt * t_pad, f_dim)                                # [bt*T, F]
    h = jnp.dot(frames, w1_ref[...],
                preferred_element_type=jnp.float32)           # [bt*T, H_pad]

    # Bias + ReLU in f32 (v5e has no bf16 VPU math); H is lane-padded to 128 so
    # this whole elementwise chain is lane-dense.
    h = jnp.maximum(h + b1_ref[...], 0.0)

    # ---- temporal mean-pool on the MXU ---------------------------------------
    # pool carries 1/T_true on real frames and 0 on zero-padded frames (which
    # would otherwise contribute ReLU(b1) != 0 to the mean).
    if bt == 1:
        pooled = jnp.dot(pool_ref[0], h,
                         preferred_element_type=jnp.float32)  # [1, H_pad]
    else:
        h3 = h.reshape(bt, t_pad, h_pad)
        pooled = jnp.einsum('bqt,bth->bqh', pool_ref[...], h3,
                            preferred_element_type=jnp.float32
                            ).reshape(bt, h_pad)              # [bt, H_pad]

    # ---- classifier head (tiny, f32), lane-padded to 128 output columns -----
    logits = jnp.dot(pooled, w2_ref[...],
                     preferred_element_type=jnp.float32) + b2_ref[...]
    o_ref[0] = logits.astype(o_ref.dtype)                     # [bt, C_pad]


def simple_audio_classification_forward(x_bchw, w1, b1, w2, b2, *,
                                         compute_dtype=jnp.bfloat16):
    """x_bchw: [B, C, n_mels, frames] spectrogram.  Feed bf16 upstream to halve
    the HBM read of x; f32 inputs are cast in-kernel.  Returns [B, num_classes]
    float32 logits."""
    B, C, M, T = x_bchw.shape
    F = C * M
    H = w1.shape[1]
    num_classes = w2.shape[1]

    LANE, SUB = 128, 8
    h_pad = -(-H // LANE) * LANE            # hidden padded to a lane multiple
    c_pad = -(-num_classes // LANE) * LANE  # classes padded to a lane multiple
    t_pad = -(-T // SUB) * SUB              # frames padded to a sublane multiple

    # Free layout fold [B, C, n_mels, T] -> [B, F, T] (adjacent dims merge; the
    # input crosses HBM exactly once, in whatever dtype the caller supplies).
    x_bft = x_bchw.reshape(B, F, T)
    if t_pad != T:  # sublane-align T; padded frames carry zero pooling weight
        x_bft = jnp.pad(x_bft, ((0, 0), (0, 0), (0, t_pad - T)))

    # ---- batch tile: this kernel is HBM/overhead-bound -----------------------
    #  * cap bt at B//2 so the grid has >= 2 parallel steps (both v7x
    #    TensorCores used, input DMA overlaps compute),
    #  * target ~2K frame rows per step to amortize ~0.35 us/step overhead,
    #  * keep the block inside a conservative cross-generation VMEM budget.
    bt_cap = B // 2 if B >= 2 else 1
    bt = max(1, min(bt_cap, max(1, 2048 // t_pad)))
    while B % bt:
        bt -= 1

    x_item = jnp.dtype(x_bft.dtype).itemsize
    w_item = jnp.dtype(compute_dtype).itemsize

    def _block_bytes(b):
        x_bytes = 2 * b * F * t_pad * x_item                 # double-buffered x
        frame_bytes = b * t_pad * F * w_item                 # transposed frames
        h_bytes = b * t_pad * h_pad * 4                      # f32 activations
        w_bytes = (F * h_pad * w_item + h_pad * c_pad * 4
                   + (h_pad + c_pad + b * t_pad) * 4)        # weights/bias/pool
        out_bytes = 2 * b * c_pad * 4
        return x_bytes + frame_bytes + h_bytes + w_bytes + out_bytes

    VMEM_BUDGET = 24 * 1024 * 1024   # safe for v7x (64 MiB phys) and v5e/v6e
    while bt > 1 and _block_bytes(bt) > VMEM_BUDGET:
        bt -= 1
        while B % bt:
            bt -= 1
    grid = B // bt

    # ---- lane-padded parameters (padding is exactly zero end-to-end) ---------
    w1_p = jnp.zeros((F, h_pad), compute_dtype).at[:, :H].set(
        w1.astype(compute_dtype))
    b1_p = jnp.zeros((1, h_pad), jnp.float32).at[:, :H].set(
        b1.reshape(1, H).astype(jnp.float32))
    w2_p = jnp.zeros((h_pad, c_pad), jnp.float32).at[:H, :num_classes].set(
        w2.astype(jnp.float32))
    b2_p = jnp.zeros((1, c_pad), jnp.float32).at[:, :num_classes].set(
        b2.reshape(1, num_classes).astype(jnp.float32))
    # Pooling weights: 1/T_true on real frames, 0 on padded frames.
    pool = jnp.zeros((bt, 1, t_pad), jnp.float32).at[:, :, :T].set(1.0 / T)

    grid_spec = pltpu.PrefetchScalarGridSpec(
        num_scalar_prefetch=0,
        grid=(grid,),
        in_specs=[
            pl.BlockSpec((bt, F, t_pad), lambda b: (b, 0, 0)),   # x batch tile
            pl.BlockSpec((F, h_pad), lambda b: (0, 0)),          # w1 (resident)
            pl.BlockSpec((1, h_pad), lambda b: (0, 0)),          # b1
            pl.BlockSpec((bt, 1, t_pad), lambda b: (0, 0, 0)),   # pooling weights
            pl.BlockSpec((h_pad, c_pad), lambda b: (0, 0)),      # w2 (lane-padded)
            pl.BlockSpec((1, c_pad), lambda b: (0, 0)),          # b2 (lane-padded)
        ],
        # 3-D lane-dense output block: last two block dims are always full dims.
        out_specs=pl.BlockSpec((1, bt, c_pad), lambda b: (b, 0, 0)),
    )

    out_padded = pl.pallas_call(
        _audio_cls_kernel,
        out_shape=jax.ShapeDtypeStruct((grid, bt, c_pad), jnp.float32),
        grid_spec=grid_spec,
        compiler_params=pltpu.CompilerParams(
            dimension_semantics=("parallel",),
            vmem_limit_bytes=32 * 1024 * 1024),
    )(x_bft, w1_p, b1_p, pool, w2_p, b2_p)

    return out_padded.reshape(B, c_pad)[:, :num_classes]


def _reference_forward(x_bchw, w1, b1, w2, b2):
    B, C, M, T = x_bchw.shape
    x_btf = jnp.swapaxes(x_bchw.reshape(B, C * M, T), 1, 2)     # [B, T, F]
    h = jnp.maximum(jnp.einsum("btf,fh->bth", x_btf, w1) + b1, 0.0)
    pooled = jnp.mean(h, axis=1)
    return pooled @ w2 + b2


if __name__ == "__main__":
    # batch=2, channels=4, n_mels=16, frames=16  ->  F = 64 features per frame.
    B, C, M, T = 2, 4, 16, 16
    F = C * M
    H = 32            # hidden size
    NUM_CLASSES = 8   # number of audio classes

    key = jax.random.PRNGKey(0)
    kx, kw1, kb1, kw2, kb2 = jax.random.split(key, 5)

    x = jax.random.normal(kx, (B, C, M, T), dtype=jnp.float32)
    w1 = jax.random.normal(kw1, (F, H), dtype=jnp.float32) * (1.0 / F ** 0.5)
    b1 = jax.random.normal(kb1, (H,), dtype=jnp.float32) * 0.01
    w2 = jax.random.normal(kw2, (H, NUM_CLASSES), dtype=jnp.float32) * (1.0 / H ** 0.5)
    b2 = jax.random.normal(kb2, (NUM_CLASSES,), dtype=jnp.float32) * 0.01

    ref = _reference_forward(x, w1, b1, w2, b2)

    # Full-f32 path: tight parity with the reference.
    out_f32 = jax.block_until_ready(
        simple_audio_classification_forward(x, w1, b1, w2, b2,
                                            compute_dtype=jnp.float32))
    assert out_f32.shape == (B, NUM_CLASSES)
    assert jnp.allclose(out_f32, ref, atol=1e-4, rtol=1e-4), "f32 mismatch vs reference"

    # Production path: bf16 spectrogram fed straight in (halves the HBM read of
    # x), bf16 MXU operands, f32 accumulation/elementwise — relaxed tolerance.
    out_bf16 = jax.block_until_ready(
        simple_audio_classification_forward(x.astype(jnp.bfloat16),
                                            w1, b1, w2, b2))
    assert out_bf16.shape == (B, NUM_CLASSES)
    assert jnp.allclose(out_bf16, ref, atol=2e-2, rtol=2e-2), "bf16 mismatch vs reference"

    print("KERNEL_OK")
</pallas_src>

<mosaic_0001>
module attributes {stable_mosaic.version = 11 : i64} {
  func.func @_audio_cls_kernel(%arg0: i32, %arg1: memref<1x64x16xf32, #tpu.memory_space<vmem>>, %arg2: memref<64x128xf32, #tpu.memory_space<vmem>>, %arg3: memref<1x128xf32, #tpu.memory_space<vmem>>, %arg4: memref<1x1x16xf32, #tpu.memory_space<vmem>>, %arg5: memref<128x128xf32, #tpu.memory_space<vmem>>, %arg6: memref<1x128xf32, #tpu.memory_space<vmem>>, %arg7: memref<1x1x128xf32, #tpu.memory_space<vmem>>) attributes {dimension_semantics = [#tpu.dimension_semantics<parallel>], iteration_bounds = array<i64: 2>, scalar_prefetch = 0 : i64, scratch_operands = 0 : i64, tpu.core_type = #tpu.core_type<tc>, window_params = [{transform_indices = @transform_0, window_bounds = array<i64: 1, 64, 16>}, {pipeline_mode = #tpu.pipeline_mode<synchronous>, transform_indices = @transform_1, window_bounds = array<i64: 64, 128>}, {pipeline_mode = #tpu.pipeline_mode<synchronous>, transform_indices = @transform_2, window_bounds = array<i64: 1, 128>}, {pipeline_mode = #tpu.pipeline_mode<synchronous>, transform_indices = @transform_3, window_bounds = array<i64: 1, 1, 16>}, {pipeline_mode = #tpu.pipeline_mode<synchronous>, transform_indices = @transform_4, window_bounds = array<i64: 128, 128>}, {pipeline_mode = #tpu.pipeline_mode<synchronous>, transform_indices = @transform_5, window_bounds = array<i64: 1, 128>}, {transform_indices = @transform_6, window_bounds = array<i64: 1, 1, 128>}]} {
    %c0 = arith.constant 0 : index
    %c0_0 = arith.constant 0 : index
    %c0_1 = arith.constant 0 : index
    %0 = vector.load %arg1[%c0, %c0_0, %c0_1] : memref<1x64x16xf32, #tpu.memory_space<vmem>>, vector<1x64x16xf32>
    %1 = vector.shape_cast %0 : vector<1x64x16xf32> to vector<64x16xf32>
    %2 = tpu.transpose %1, [1, 0] : vector<64x16xf32> -> vector<16x64xf32>
    %c0_2 = arith.constant 0 : index
    %c0_3 = arith.constant 0 : index
    %3 = vector.load %arg2[%c0_2, %c0_3] : memref<64x128xf32, #tpu.memory_space<vmem>>, vector<64x128xf32>
    %cst = arith.constant dense<0.000000e+00> : vector<16x128xf32>
    %4 = tpu.matmul %2, %3, %cst {dimension_numbers = #tpu.dot_dimension_numbers<[1], [0], [0], [1], [0, 0, 1, 1], [], []>} : vector<16x64xf32>, vector<64x128xf32>, vector<16x128xf32> -> vector<16x128xf32>
    %c0_4 = arith.constant 0 : index
    %c0_5 = arith.constant 0 : index
    %5 = vector.load %arg3[%c0_4, %c0_5] : memref<1x128xf32, #tpu.memory_space<vmem>>, vector<1x128xf32>
    %6 = vector.broadcast %5 : vector<1x128xf32> to vector<16x128xf32>
    %7 = arith.addf %4, %6 : vector<16x128xf32>
    %cst_6 = arith.constant 0.000000e+00 : f32
    %8 = vector.broadcast %cst_6 : f32 to vector<16x128xf32>
    %9 = arith.maximumf %7, %8 : vector<16x128xf32>
    %c0_7 = arith.constant 0 : index
    %c0_8 = arith.constant 0 : index
    %c0_9 = arith.constant 0 : index
    %10 = vector.load %arg4[%c0_7, %c0_8, %c0_9] : memref<1x1x16xf32, #tpu.memory_space<vmem>>, vector<1x1x16xf32>
    %11 = vector.shape_cast %10 : vector<1x1x16xf32> to vector<1x16xf32>
    %cst_10 = arith.constant dense<0.000000e+00> : vector<1x128xf32>
    %12 = tpu.matmul %11, %9, %cst_10 {dimension_numbers = #tpu.dot_dimension_numbers<[1], [0], [0], [1], [0, 0, 1, 1], [], []>} : vector<1x16xf32>, vector<16x128xf32>, vector<1x128xf32> -> vector<1x128xf32>
    %c0_11 = arith.constant 0 : index
    %c0_12 = arith.constant 0 : index
    %13 = vector.load %arg5[%c0_11, %c0_12] : memref<128x128xf32, #tpu.memory_space<vmem>>, vector<128x128xf32>
    %cst_13 = arith.constant dense<0.000000e+00> : vector<1x128xf32>
    %14 = tpu.matmul %12, %13, %cst_13 {dimension_numbers = #tpu.dot_dimension_numbers<[1], [0], [0], [1], [0, 0, 1, 1], [], []>} : vector<1x128xf32>, vector<128x128xf32>, vector<1x128xf32> -> vector<1x128xf32>
    %c0_14 = arith.constant 0 : index
    %c0_15 = arith.constant 0 : index
    %15 = vector.load %arg6[%c0_14, %c0_15] : memref<1x128xf32, #tpu.memory_space<vmem>>, vector<1x128xf32>
    %16 = arith.addf %14, %15 : vector<1x128xf32>
    %c0_16 = arith.constant 0 : index
    %c0_17 = arith.constant 0 : index
    %c0_18 = arith.constant 0 : index
    %17 = vector.load %arg7[%c0_16, %c0_17, %c0_18] : memref<1x1x128xf32, #tpu.memory_space<vmem>>, vector<1x1x128xf32>
    %18 = vector.shape_cast %17 : vector<1x1x128xf32> to vector<1x128xf32>
    %19 = vector.shape_cast %16 : vector<1x128xf32> to vector<1x1x128xf32>
    tpu.vector_store %arg7[%c0_16, %c0_17, %c0_18], %19 {strides = array<i32>} : memref<1x1x128xf32, #tpu.memory_space<vmem>>, vector<1x1x128xf32>,
    return
  }
  func.func @transform_0(%arg0: i32) -> (i32, i32, i32) {
    %c0_i32 = arith.constant 0 : i32
    %c0_i32_0 = arith.constant 0 : i32
    %c0_i32_1 = arith.constant 0 : i32
    return %arg0, %c0_i32, %c0_i32_0 : i32, i32, i32
  }
  func.func @transform_1(%arg0: i32) -> (i32, i32) {
    %c0_i32 = arith.constant 0 : i32
    %c0_i32_0 = arith.constant 0 : i32
    %c0_i32_1 = arith.constant 0 : i32
    return %c0_i32, %c0_i32_0 : i32, i32
  }
  func.func @transform_2(%arg0: i32) -> (i32, i32) {
    %c0_i32 = arith.constant 0 : i32
    %c0_i32_0 = arith.constant 0 : i32
    %c0_i32_1 = arith.constant 0 : i32
    return %c0_i32, %c0_i32_0 : i32, i32
  }
  func.func @transform_3(%arg0: i32) -> (i32, i32, i32) {
    %c0_i32 = arith.constant 0 : i32
    %c0_i32_0 = arith.constant 0 : i32
    %c0_i32_1 = arith.constant 0 : i32
    %c0_i32_2 = arith.constant 0 : i32
    return %c0_i32, %c0_i32_0, %c0_i32_1 : i32, i32, i32
  }
  func.func @transform_4(%arg0: i32) -> (i32, i32) {
    %c0_i32 = arith.constant 0 : i32
    %c0_i32_0 = arith.constant 0 : i32
    %c0_i32_1 = arith.constant 0 : i32
    return %c0_i32, %c0_i32_0 : i32, i32
  }
  func.func @transform_5(%arg0: i32) -> (i32, i32) {
    %c0_i32 = arith.constant 0 : i32
    %c0_i32_0 = arith.constant 0 : i32
    %c0_i32_1 = arith.constant 0 : i32
    return %c0_i32, %c0_i32_0 : i32, i32
  }
  func.func @transform_6(%arg0: i32) -> (i32, i32, i32) {
    %c0_i32 = arith.constant 0 : i32
    %c0_i32_0 = arith.constant 0 : i32
    %c0_i32_1 = arith.constant 0 : i32
    return %arg0, %c0_i32, %c0_i32_0 : i32, i32, i32
  }
}

</mosaic_0001>

<llo_original>
// kernel: tpu_custom_call.1
$region0: #{tpu_custom_call.1}
  #allocation0 [shape = 'u32[]', space=smem, size = 0x4, offset = 0x4, fixed_abs, tag = 'smem constant byte address 0x4 - core index']
  #allocation1 [shape = 'u32[144,128]{1,0:T(1,128)}', space=vmem, size = 0x12000, scoped, tag = 'internal scratch']
  %s0 = inlined_call_operand.vmem [shape: f32[2,64,16], index: 0, kind: input, shape index: {}]
  %s1 = inlined_call_operand.hbm [shape: f32[64,128], index: 1, kind: input, shape index: {}]
  %s2 = inlined_call_operand.vmem [shape: f32[1,128], index: 2, kind: input, shape index: {}]
  %s3 = inlined_call_operand.vmem [shape: f32[1,1,16], index: 3, kind: input, shape index: {}]
  %s4 = inlined_call_operand.vmem [shape: f32[128,128], index: 4, kind: input, shape index: {}]
  %s5 = inlined_call_operand.vmem [shape: f32[1,128], index: 5, kind: input, shape index: {}]
  %s6 = inlined_call_operand.hbm [shape: f32[2,1,128], index: 6, kind: output, shape index: {}]
  %s7 = sld [smem:[#allocation0]]
  $region61: #{tpu_custom_call.1} parent=0
    _
  %s9 = ssub.s32 1, %s7
  %s10 = scalar_select 0, %s9, %s7
  $region1: #{tpu_custom_call.1} parent=0
    #allocation2 [shape = 'u8[32768]{0}', space=vmem, size = 0x8000, scoped, tag = 'input window, operand 1, single buffered']
    #allocation3 [shape = 's32[2]{0}', space=sflag, size = 0x8, scoped, tag = 'scoped memory for tpu_custom_call.1']
    #allocation4 [shape = 's32[2]{0}', space=sflag, size = 0x8, scoped, tag = 'scoped memory for tpu_custom_call.1']
    #allocation5 [shape = 'u8[1024]{0}', space=vmem, size = 0x400, scoped, tag = 'output window, operand 0']
    %11 = vsyncpa [#allocation3], 0
    %12 = vsyncpa [#allocation4], 0
    %s13 = scalar_lea.sflag [#allocation4], 1
    %14 = vsyncpa %s13, 0
    loop: start=0, step=1, limit=4
    $region2: #{tpu_custom_call.1} parent=1 // loop_pre_header
      _
    $region3: #{tpu_custom_call.1} parent=1 // loop_header
      %s16 = sphi 0, %s20
      %p17 = scmp.ge.s32.totalorder %s16, 4
      %s26 = sphi 0, %s28
      %s29 = sphi 0, %s26
      %s30 = sphi 0, %s29
      %s46 = sphi 0, %s30
      %s50 = sphi 0, %s50
      %s52 = sphi 0, %s50
      %s53 = sphi 0, %s52
      %s67 = sphi 0, %s53
      %s71 = sphi 0, %s71
      %s73 = sphi 0, %s71
      %s74 = sphi 0, %s73
      %s88 = sphi 0, %s74
      %s92 = sphi 0, %s92
      %s94 = sphi 0, %s92
      %s95 = sphi 0, %s94
      %s109 = sphi 0, %s95
      %s113 = sphi 0, %s113
      %s115 = sphi 0, %s113
      %s116 = sphi 0, %s115
      %s130 = sphi 0, %s116
      %s134 = sphi 0, %s134
      %s136 = sphi 0, %s134
      %s137 = sphi 0, %s136
      %s151 = sphi 0, %s137
      %s157 = sphi 0, %s159
      %s160 = sphi 0, %s157
      %s161 = sphi 0, %s160
      %s177 = sphi 0, %s161
    $region4: #{tpu_custom_call.1} parent=1 // loop_header_branch
      %19 = sbr.rel (%p17) target = $region8
    $region5: #{tpu_custom_call.1} parent=1 // loop_body
      %s21 = ssub.s32 %s16, 1
      %s22 = ssub.s32 %s16, 2
      %s23 = sadd.s32 %s16, 1
      %s24 = ssub.s32 %s16, %s23
      %p25 = scmp.eq.s32.totalorder %s24, 0
      %s27 = sadd.s32 %s26, 1
      %s28 = scalar_select %p25, %s26, %s27
      %p31 = pneg %p25
      %p32 = scmp.eq.s32.totalorder %s16, 1
      %p33 = por %p31, %p32
      %p34 = scmp.ne.s32.totalorder %s26, %s29
      %p35 = scmp.eq.s32.totalorder %s16, 0
      %p36 = por %p34, %p35
      %p37 = scmp.ne.s32.totalorder %s26, %s29
      %p38 = scmp.eq.s32.totalorder %s21, 1
      %p39 = por %p37, %p38
      %p40 = scmp.ne.s32.totalorder %s29, %s30
      %p41 = scmp.eq.s32.totalorder %s21, 0
      %p42 = por %p40, %p41
      %p43 = scmp.ne.s32.totalorder %s29, %s30
      %p44 = scmp.eq.s32.totalorder %s22, 1
      %p45 = por %p43, %p44
      %p47 = scmp.ne.s32.totalorder %s30, %s46
      %p48 = scmp.eq.s32.totalorder %s22, 0
      %p49 = por %p47, %p48
      %s51 = sadd.s32 %s50, 1
      %p54 = scmp.eq.s32.totalorder %s16, 1
      %p55 = scmp.ne.s32.totalorder %s50, %s52
      %p56 = scmp.eq.s32.totalorder %s16, 0
      %p57 = por %p55, %p56
      %p58 = scmp.ne.s32.totalorder %s50, %s52
      %p59 = scmp.eq.s32.totalorder %s21, 1
      %p60 = por %p58, %p59
      %p61 = scmp.ne.s32.totalorder %s52, %s53
      %p62 = scmp.eq.s32.totalorder %s21, 0
      %p63 = por %p61, %p62
      %p64 = scmp.ne.s32.totalorder %s52, %s53
      %p65 = scmp.eq.s32.totalorder %s22, 1
      %p66 = por %p64, %p65
      %p68 = scmp.ne.s32.totalorder %s53, %s67
      %p69 = scmp.eq.s32.totalorder %s22, 0
      %p70 = por %p68, %p69
      %s72 = sadd.s32 %s71, 1
      %p75 = scmp.eq.s32.totalorder %s16, 1
      %p76 = scmp.ne.s32.totalorder %s71, %s73
      %p77 = scmp.eq.s32.totalorder %s16, 0
      %p78 = por %p76, %p77
      %p79 = scmp.ne.s32.totalorder %s71, %s73
      %p80 = scmp.eq.s32.totalorder %s21, 1
      %p81 = por %p79, %p80
      %p82 = scmp.ne.s32.totalorder %s73, %s74
      %p83 = scmp.eq.s32.totalorder %s21, 0
      %p84 = por %p82, %p83
      %p85 = scmp.ne.s32.totalorder %s73, %s74
      %p86 = scmp.eq.s32.totalorder %s22, 1
      %p87 = por %p85, %p86
      %p89 = scmp.ne.s32.totalorder %s74, %s88
      %p90 = scmp.eq.s32.totalorder %s22, 0
      %p91 = por %p89, %p90
      %s93 = sadd.s32 %s92, 1
      %p96 = scmp.eq.s32.totalorder %s16, 1
      %p97 = scmp.ne.s32.totalorder %s92, %s94
      %p98 = scmp.eq.s32.totalorder %s16, 0
      %p99 = por %p97, %p98
      %p100 = scmp.ne.s32.totalorder %s92, %s94
      %p101 = scmp.eq.s32.totalorder %s21, 1
      %p102 = por %p100, %p101
      %p103 = scmp.ne.s32.totalorder %s94, %s95
      %p104 = scmp.eq.s32.totalorder %s21, 0
      %p105 = por %p103, %p104
      %p106 = scmp.ne.s32.totalorder %s94, %s95
      %p107 = scmp.eq.s32.totalorder %s22, 1
      %p108 = por %p106, %p107
      %p110 = scmp.ne.s32.totalorder %s95, %s109
      %p111 = scmp.eq.s32.totalorder %s22, 0
      %p112 = por %p110, %p111
      %s114 = sadd.s32 %s113, 1
      %p117 = scmp.eq.s32.totalorder %s16, 1
      %p118 = scmp.ne.s32.totalorder %s113, %s115
      %p119 = scmp.eq.s32.totalorder %s16, 0
      %p120 = por %p118, %p119
      %p121 = scmp.ne.s32.totalorder %s113, %s115
      %p122 = scmp.eq.s32.totalorder %s21, 1
      %p123 = por %p121, %p122
      %p124 = scmp.ne.s32.totalorder %s115, %s116
      %p125 = scmp.eq.s32.totalorder %s21, 0
      %p126 = por %p124, %p125
      %p127 = scmp.ne.s32.totalorder %s115, %s116
      %p128 = scmp.eq.s32.totalorder %s22, 1
      %p129 = por %p127, %p128
      %p131 = scmp.ne.s32.totalorder %s116, %s130
      %p132 = scmp.eq.s32.totalorder %s22, 0
      %p133 = por %p131, %p132
      %s135 = sadd.s32 %s134, 1
      %p138 = scmp.eq.s32.totalorder %s16, 1
      %p139 = scmp.ne.s32.totalorder %s134, %s136
      %p140 = scmp.eq.s32.totalorder %s16, 0
      %p141 = por %p139, %p140
      %p142 = scmp.ne.s32.totalorder %s134, %s136
      %p143 = scmp.eq.s32.totalorder %s21, 1
      %p144 = por %p142, %p143
      %p145 = scmp.ne.s32.totalorder %s136, %s137
      %p146 = scmp.eq.s32.totalorder %s21, 0
      %p147 = por %p145, %p146
      %p148 = scmp.ne.s32.totalorder %s136, %s137
      %p149 = scmp.eq.s32.totalorder %s22, 1
      %p150 = por %p148, %p149
      %p152 = scmp.ne.s32.totalorder %s137, %s151
      %p153 = scmp.eq.s32.totalorder %s22, 0
      %p154 = por %p152, %p153
      %s155 = ssub.s32 %s16, %s23
      %p156 = scmp.eq.s32.totalorder %s155, 0
      %s158 = sadd.s32 %s157, 1
      %s159 = scalar_select %p156, %s157, %s158
      %p162 = pneg %p156
      %p163 = scmp.eq.s32.totalorder %s16, 1
      %p164 = por %p162, %p163
      %p165 = scmp.ne.s32.totalorder %s157, %s160
      %p166 = scmp.eq.s32.totalorder %s16, 0
      %p167 = por %p165, %p166
      %p168 = scmp.ne.s32.totalorder %s157, %s160
      %p169 = scmp.eq.s32.totalorder %s21, 1
      %p170 = por %p168, %p169
      %p171 = scmp.ne.s32.totalorder %s160, %s161
      %p172 = scmp.eq.s32.totalorder %s21, 0
      %p173 = por %p171, %p172
      %p174 = scmp.ne.s32.totalorder %s160, %s161
      %p175 = scmp.eq.s32.totalorder %s22, 1
      %p176 = por %p174, %p175
      %p178 = scmp.ne.s32.totalorder %s161, %s177
      %p179 = scmp.eq.s32.totalorder %s22, 0
      %p180 = por %p178, %p179
      %p181 = scmp.le.s32.totalorder 1, %s16
      %p182 = scmp.lt.s32.totalorder %s16, 3
      %p183 = pnand %p181, %p182
      %p184 = pneg %p183
      // Predicated region
      $region9: #{tpu_custom_call.1} parent=5 // pred_check
        _
      $region10: #{tpu_custom_call.1} parent=5 // pred_check_branch
        %186 = sbr.rel (%p183) target = $region12
      $region11: #{tpu_custom_call.1} parent=5 // pred_region
        %s187 = ssub.s32 %s16, 1
        // Predicated region
        $region13: #{tpu_custom_call.1} parent=11 // pred_check
          %p188 = pneg %p63
        $region14: #{tpu_custom_call.1} parent=11 // pred_check_branch
          %190 = sbr.rel (%p188) target = $region16
        $region15: #{tpu_custom_call.1} parent=11 // pred_region
          %s192 = ssub.s32 1024, 1024
          %193 = vsyncadd [#allocation3], %s192
          %s194 = sshll.u32 [#allocation2], 4
          %s195 = int_to_ptr.vmem [resolvable:$true] %s194
          %200 = dma.hbm_to_vmem [thread:$0]  %s1, 1024, %s195, [#allocation3], 128, 128, 8
        $region16: #{tpu_custom_call.1} parent=11 // pred_fallthru
          _
        // Predicated region
        $region17: #{tpu_custom_call.1} parent=11 // pred_check
          %p201 = pneg %p84
        $region18: #{tpu_custom_call.1} parent=11 // pred_check_branch
          %203 = sbr.rel (%p201) target = $region20
        $region19: #{tpu_custom_call.1} parent=11 // pred_region
          _
        $region20: #{tpu_custom_call.1} parent=11 // pred_fallthru
          _
        // Predicated region
        $region21: #{tpu_custom_call.1} parent=11 // pred_check
          %p204 = pneg %p105
        $region22: #{tpu_custom_call.1} parent=11 // pred_check_branch
          %206 = sbr.rel (%p204) target = $region24
        $region23: #{tpu_custom_call.1} parent=11 // pred_region
          _
        $region24: #{tpu_custom_call.1} parent=11 // pred_fallthru
          _
        // Predicated region
        $region25: #{tpu_custom_call.1} parent=11 // pred_check
          %p207 = pneg %p126
        $region26: #{tpu_custom_call.1} parent=11 // pred_check_branch
          %209 = sbr.rel (%p207) target = $region28
        $region27: #{tpu_custom_call.1} parent=11 // pred_region
          _
        $region28: #{tpu_custom_call.1} parent=11 // pred_fallthru
          _
        // Predicated region
        $region29: #{tpu_custom_call.1} parent=11 // pred_check
          %p210 = pneg %p147
        $region30: #{tpu_custom_call.1} parent=11 // pred_check_branch
          %212 = sbr.rel (%p210) target = $region32
        $region31: #{tpu_custom_call.1} parent=11 // pred_region
          _
        $region32: #{tpu_custom_call.1} parent=11 // pred_fallthru
          _
      $region12: #{tpu_custom_call.1} parent=5 // pred_fallthru
        _
      %p213 = scmp.lt.s32.totalorder %s16, 2
      // Predicated region
      $region33: #{tpu_custom_call.1} parent=5 // pred_check
        %p214 = pneg %p213
      $region34: #{tpu_custom_call.1} parent=5 // pred_check_branch
        %216 = sbr.rel (%p214) target = $region36
      $region35: #{tpu_custom_call.1} parent=5 // pred_region
        // Predicated region
        $region37: #{tpu_custom_call.1} parent=35 // pred_check
          %p217 = pneg %p36
        $region38: #{tpu_custom_call.1} parent=35 // pred_check_branch
          %219 = sbr.rel (%p217) target = $region40
        $region39: #{tpu_custom_call.1} parent=35 // pred_region
          %p220 = scmp.lt.s32.totalorder %s16, 1
          %s221 = scalar_select %p220, %s16, 1
          %s222 = smul.addr %s221, 8
          %s223 = smul.addr %s222, 8
          %s224 = scalar_lea.vmem %s0, %s223
        $region40: #{tpu_custom_call.1} parent=35 // pred_fallthru
          _
      $region36: #{tpu_custom_call.1} parent=5 // pred_fallthru
        _
      %p225 = scmp.le.s32.totalorder 1, %s16
      %p226 = scmp.lt.s32.totalorder %s16, 3
      %p227 = pnand %p225, %p226
      %p228 = pneg %p227
      // Predicated region
      $region41: #{tpu_custom_call.1} parent=5 // pred_check
        _
      $region42: #{tpu_custom_call.1} parent=5 // pred_check_branch
        %230 = sbr.rel (%p227) target = $region44
      $region43: #{tpu_custom_call.1} parent=5 // pred_region
        %s231 = ssub.s32 %s16, 1
        // Predicated region
        $region45: #{tpu_custom_call.1} parent=43 // pred_check
          %p232 = pneg %p63
        $region46: #{tpu_custom_call.1} parent=43 // pred_check_branch
          %234 = sbr.rel (%p232) target = $region48
        $region47: #{tpu_custom_call.1} parent=43 // pred_region
          %235 = dma.done [#allocation3], 1024
        $region48: #{tpu_custom_call.1} parent=43 // pred_fallthru
          _
        %p236 = scmp.lt.s32.totalorder %s21, 1
        %s237 = scalar_select %p236, %s21, 1
        %s238 = smul.addr %s237, 8
        %s239 = smul.addr %s238, 8
        %s240 = scalar_lea.vmem %s0, %s239
        %p241 = pneg %p42
        %p242 = pneg %p39
        %p243 = pneg %p63
        %p244 = pneg %p60
        %p245 = pneg %p84
        %p246 = pneg %p81
        %p247 = pneg %p105
        %p248 = pneg %p102
        %p249 = pneg %p126
        %p250 = pneg %p123
        %p251 = pneg %p147
        %p252 = pneg %p144
        %p253 = pneg %p173
        %p254 = pneg %p170
        %s255 = sand.u32 %s160, 1
        %s256 = scalar_lea.sflag [#allocation4], %s255
        %s257 = sand.u32 %s160, 1
        %s258 = scalar_lea.vmem [#allocation5], %s257
        %p259 = scmp.lt.s32.totalorder %s21, 1
        %s260 = scalar_select %p259, %s21, 1
        %s261 = smul.addr %s260, 8
        %s262 = smul.addr %s261, 8
        %s263 = scalar_lea.vmem %s0, %s262
        %v264 = vld [vmem:[%s263] sm:$0xff]
        %v265 = vld [vmem:[%s263 + $0x8] sm:$0xff]
        %v266 = vld [vmem:[%s263 + $0x10] sm:$0xff]
        %v267 = vld [vmem:[%s263 + $0x18] sm:$0xff]
        %v268 = vld [vmem:[%s263 + $0x20] sm:$0xff]
        %v269 = vld [vmem:[%s263 + $0x28] sm:$0xff]
        %v270 = vld [vmem:[%s263 + $0x30] sm:$0xff]
        %v271 = vld [vmem:[%s263 + $0x38] sm:$0xff]
        %272 = vxpose.xlu0.b32.start [1/16] %v264, 128
        %273 = vxpose.xlu0.b32.cont [2/16] %v265, 128
        %274 = vxpose.xlu0.b32.cont [3/16] %v266, 128
        %275 = vxpose.xlu0.b32.cont [4/16] %v267, 128
        %276 = vxpose.xlu0.b32.cont [5/16] %v268, 128
        %277 = vxpose.xlu0.b32.cont [6/16] %v269, 128
        %278 = vxpose.xlu0.b32.cont [7/16] %v270, 128
        %279 = vxpose.xlu0.b32.cont [8/16] %v271, 128
        %280 = vxpose.xlu0.b32.cont [9/16] 0.0, 128
        %281 = vxpose.xlu0.b32.cont [10/16] 0.0, 128
        %282 = vxpose.xlu0.b32.cont [11/16] 0.0, 128
        %283 = vxpose.xlu0.b32.cont [12/16] 0.0, 128
        %284 = vxpose.xlu0.b32.cont [13/16] 0.0, 128
        %285 = vxpose.xlu0.b32.cont [14/16] 0.0, 128
        %286 = vxpose.xlu0.b32.cont [15/16] 0.0, 128
        %287 = vxpose.xlu0.b32.end [16/16] 0.0, 128
        %v288 = vpop.trf.xlu0
        %v289 = vpop.trf.xlu0
        %v290 = vpop.trf.xlu0
        %v291 = vpop.trf.xlu0
        %v292 = vpop.trf.xlu0
        %v293 = vpop.trf.xlu0
        %v294 = vpop.trf.xlu0
        %v295 = vpop.trf.xlu0
        %v296 = vpop.trf.xlu0
        %v297 = vpop.trf.xlu0
        %v298 = vpop.trf.xlu0
        %v299 = vpop.trf.xlu0
        %v300 = vpop.trf.xlu0
        %v301 = vpop.trf.xlu0
        %v302 = vpop.trf.xlu0
        %v303 = vpop.trf.xlu0
        %v304 = vld [vmem:[#allocation2] sm:$0xff]
        %v305 = vld [vmem:[#allocation2 + $0x8] sm:$0xff]
        %v306 = vld [vmem:[#allocation2 + $0x10] sm:$0xff]
        %v307 = vld [vmem:[#allocation2 + $0x18] sm:$0xff]
        %v308 = vld [vmem:[#allocation2 + $0x20] sm:$0xff]
        %v309 = vld [vmem:[#allocation2 + $0x28] sm:$0xff]
        %v310 = vld [vmem:[#allocation2 + $0x30] sm:$0xff]
        %v311 = vld [vmem:[#allocation2 + $0x38] sm:$0xff]
        %v312 = vld [vmem:[%s2] sm:$0x1]
        %v314 = vlaneseq
        %v315 = vshrl.u32 %v314, 7
        %v316 = vsub.s32 0, %v315
        %v317 = vrot.slane %v312, %v316
        %vm319 = vcmask 523264
        %v321 = vsel %vm319, %v288, 0
        %v324 = vsel %vm319, %v289, 0
        %326 = vmatprep.subr.mxu0 0.0
        %327 = vmatpush1.msra.mxu0 %v304
        %328 = vmatprep.subr.mxu0 0.0
        %329 = vmatpush1.msra.mxu0 %v305
        %330 = vmatprep.subr.mxu0 0.0
        %331 = vmatpush1.msra.mxu0 %v306
        %332 = vmatprep.subr.mxu0 0.0
        %333 = vmatpush1.msra.mxu0 %v307
        %334 = vmatprep.subr.mxu0 0.0
        %335 = vmatpush1.msra.mxu0 %v308
        %336 = vmatprep.subr.mxu0 0.0
        %337 = vmatpush1.msra.mxu0 %v309
        %338 = vmatprep.subr.mxu0 0.0
        %339 = vmatpush1.msra.mxu0 %v310
        %340 = vmatprep.subr.mxu0 0.0
        %341 = vmatpush1.msra.mxu0 %v311
        %342 = vmatprep.subr.mxu0 0.0
        %343 = vmatpush1.msra.mxu0 0.0
        %344 = vmatprep.subr.mxu0 0.0
        %345 = vmatpush1.msra.mxu0 0.0
        %346 = vmatprep.subr.mxu0 0.0
        %347 = vmatpush1.msra.mxu0 0.0
        %348 = vmatprep.subr.mxu0 0.0
        %349 = vmatpush1.msra.mxu0 0.0
        %350 = vmatprep.subr.mxu0 0.0
        %351 = vmatpush1.msra.mxu0 0.0
        %352 = vmatprep.subr.mxu0 0.0
        %353 = vmatpush1.msra.mxu0 0.0
        %354 = vmatprep.subr.mxu0 0.0
        %355 = vmatpush1.msra.mxu0 0.0
        %356 = vmatprep.subr.mxu0 0.0
        %357 = vmatpush1.msra.mxu0 0.0
        %358 = vmatprep.subr.mxu0 0.0
        %359 = vmatpush1.msra.mxu0 0.0
        %360 = vmatprep.subr.mxu0 0.0
        %361 = vmatpush1.msra.mxu0 0.0
        %362 = vmatprep.subr.mxu0 0.0
        %363 = vmatpush1.msra.mxu0 0.0
        %364 = vmatprep.subr.mxu0 0.0
        %365 = vmatpush1.msra.mxu0 0.0
        %366 = vmatprep.subr.mxu0 0.0
        %367 = vmatpush1.msra.mxu0 0.0
        %368 = vmatprep.subr.mxu0 0.0
        %369 = vmatpush1.msra.mxu0 0.0
        %370 = vmatprep.subr.mxu0 0.0
        %371 = vmatpush1.msra.mxu0 0.0
        %372 = vmatprep.subr.mxu0 0.0
        %373 = vmatpush1.msra.mxu0 0.0
        %374 = vmatprep.subr.mxu0 0.0
        %375 = vmatpush1.msra.mxu0 0.0
        %376 = vmatprep.subr.mxu0 0.0
        %377 = vmatpush1.msra.mxu0 0.0
        %378 = vmatprep.subr.mxu0 0.0
        %379 = vmatpush1.msra.mxu0 0.0
        %380 = vmatprep.subr.mxu0 0.0
        %381 = vmatpush1.msra.mxu0 0.0
        %382 = vmatprep.subr.mxu0 0.0
        %383 = vmatpush1.msra.mxu0 0.0
        %384 = vmatprep.subr.mxu0 0.0
        %385 = vmatpush1.msra.mxu0 0.0
        %386 = vmatprep.subr.mxu0 0.0
        %387 = vmatpush1.msra.mxu0 0.0
        %388 = vmatprep.subr.mxu0 0.0
        %389 = vmatpush1.msra.mxu0 0.0
        %390 = vmatprep.mubr.f32.mxu0 0.0
        %391 = vmatmul.mubr.f32.gmra.mrb[0].mxu0 %v321
        %v392 = vpop.f32.mrb[0].mxu0
        %v393 = vadd.f32 %v317, %v392
        %v394 = vpop.f32.mrb[0].mxu0
        %395 = vmatprep.mubr.f32.mxu0 0.0
        %396 = vmatmul.mubr.f32.gmra.mrb[0].mxu0 %v324
        %v397 = vpop.f32.mrb[0].mxu0
        %v398 = vadd.f32 %v317, %v397
        %v399 = vpop.f32.mrb[0].mxu0
        %400 = vdwg.mxu0
        %v401 = vmax.f32 %v393, 0.0
        %v402 = vmax.f32 %v398, 0.0
        %v403 = vld [vmem:[%s3] sm:$0x1]
        %vm404 = vcmask 130048
        %v406 = vsel %vm404, %v403, 0
        %408 = vmatprep.subr.mxu0 0.0
        %409 = vmatpush1.msra.mxu0 %v401
        %410 = vmatprep.subr.mxu0 0.0
        %411 = vmatpush1.msra.mxu0 %v402
        %412 = vmatprep.subr.mxu0 0.0
        %413 = vmatpush1.msra.mxu0 0.0
        %414 = vmatprep.subr.mxu0 0.0
        %415 = vmatpush1.msra.mxu0 0.0
        %416 = vmatprep.subr.mxu0 0.0
        %417 = vmatpush1.msra.mxu0 0.0
        %418 = vmatprep.subr.mxu0 0.0
        %419 = vmatpush1.msra.mxu0 0.0
        %420 = vmatprep.subr.mxu0 0.0
        %421 = vmatpush1.msra.mxu0 0.0
        %422 = vmatprep.subr.mxu0 0.0
        %423 = vmatpush1.msra.mxu0 0.0
        %424 = vmatprep.subr.mxu0 0.0
        %425 = vmatpush1.msra.mxu0 0.0
        %426 = vmatprep.subr.mxu0 0.0
        %427 = vmatpush1.msra.mxu0 0.0
        %428 = vmatprep.subr.mxu0 0.0
        %429 = vmatpush1.msra.mxu0 0.0
        %430 = vmatprep.subr.mxu0 0.0
        %431 = vmatpush1.msra.mxu0 0.0
        %432 = vmatprep.subr.mxu0 0.0
        %433 = vmatpush1.msra.mxu0 0.0
        %434 = vmatprep.subr.mxu0 0.0
        %435 = vmatpush1.msra.mxu0 0.0
        %436 = vmatprep.subr.mxu0 0.0
        %437 = vmatpush1.msra.mxu0 0.0
        %438 = vmatprep.subr.mxu0 0.0
        %439 = vmatpush1.msra.mxu0 0.0
        %440 = vmatprep.subr.mxu0 0.0
        %441 = vmatpush1.msra.mxu0 0.0
        %442 = vmatprep.subr.mxu0 0.0
        %443 = vmatpush1.msra.mxu0 0.0
        %444 = vmatprep.subr.mxu0 0.0
        %445 = vmatpush1.msra.mxu0 0.0
        %446 = vmatprep.subr.mxu0 0.0
        %447 = vmatpush1.msra.mxu0 0.0
        %448 = vmatprep.subr.mxu0 0.0
        %449 = vmatpush1.msra.mxu0 0.0
        %450 = vmatprep.subr.mxu0 0.0
        %451 = vmatpush1.msra.mxu0 0.0
        %452 = vmatprep.subr.mxu0 0.0
        %453 = vmatpush1.msra.mxu0 0.0
        %454 = vmatprep.subr.mxu0 0.0
        %455 = vmatpush1.msra.mxu0 0.0
        %456 = vmatprep.subr.mxu0 0.0
        %457 = vmatpush1.msra.mxu0 0.0
        %458 = vmatprep.subr.mxu0 0.0
        %459 = vmatpush1.msra.mxu0 0.0
        %460 = vmatprep.subr.mxu0 0.0
        %461 = vmatpush1.msra.mxu0 0.0
        %462 = vmatprep.subr.mxu0 0.0
        %463 = vmatpush1.msra.mxu0 0.0
        %464 = vmatprep.subr.mxu0 0.0
        %465 = vmatpush1.msra.mxu0 0.0
        %466 = vmatprep.subr.mxu0 0.0
        %467 = vmatpush1.msra.mxu0 0.0
        %468 = vmatprep.subr.mxu0 0.0
        %469 = vmatpush1.msra.mxu0 0.0
        %470 = vmatprep.subr.mxu0 0.0
        %471 = vmatpush1.msra.mxu0 0.0
        %472 = vmatprep.mubr.f32.mxu0 0.0
        %473 = vmatmul.mubr.f32.gmra.mrb[0].mxu0 %v406
        %v474 = vpop.f32.mrb[0].mxu0
        %v475 = vadd.f32 0.0, %v474
        %v476 = vpop.f32.mrb[0].mxu0
        %477 = vdwg.mxu0
        %v478 = vld [vmem:[%s4] sm:$0xff]
        %v479 = vld [vmem:[%s4 + $0x8] sm:$0xff]
        %v480 = vld [vmem:[%s4 + $0x10] sm:$0xff]
        %v481 = vld [vmem:[%s4 + $0x18] sm:$0xff]
        %v482 = vld [vmem:[%s4 + $0x20] sm:$0xff]
        %v483 = vld [vmem:[%s4 + $0x28] sm:$0xff]
        %v484 = vld [vmem:[%s4 + $0x30] sm:$0xff]
        %v485 = vld [vmem:[%s4 + $0x38] sm:$0xff]
        %v486 = vld [vmem:[%s4 + $0x40] sm:$0xff]
        %v487 = vld [vmem:[%s4 + $0x48] sm:$0xff]
        %v488 = vld [vmem:[%s4 + $0x50] sm:$0xff]
        %v489 = vld [vmem:[%s4 + $0x58] sm:$0xff]
        %v490 = vld [vmem:[%s4 + $0x60] sm:$0xff]
        %v491 = vld [vmem:[%s4 + $0x68] sm:$0xff]
        %v492 = vld [vmem:[%s4 + $0x70] sm:$0xff]
        %v493 = vld [vmem:[%s4 + $0x78] sm:$0xff]
        %v494 = vld [vmem:[%s5] sm:$0x1]
        %495 = vmatprep.subr.mxu0 0.0
        %496 = vmatpush1.msra.mxu0 %v478
        %497 = vmatprep.subr.mxu0 0.0
        %498 = vmatpush1.msra.mxu0 %v479
        %499 = vmatprep.subr.mxu0 0.0
        %500 = vmatpush1.msra.mxu0 %v480
        %501 = vmatprep.subr.mxu0 0.0
        %502 = vmatpush1.msra.mxu0 %v481
        %503 = vmatprep.subr.mxu0 0.0
        %504 = vmatpush1.msra.mxu0 %v482
        %505 = vmatprep.subr.mxu0 0.0
        %506 = vmatpush1.msra.mxu0 %v483
        %507 = vmatprep.subr.mxu0 0.0
        %508 = vmatpush1.msra.mxu0 %v484
        %509 = vmatprep.subr.mxu0 0.0
        %510 = vmatpush1.msra.mxu0 %v485
        %511 = vmatprep.subr.mxu0 0.0
        %512 = vmatpush1.msra.mxu0 %v486
        %513 = vmatprep.subr.mxu0 0.0
        %514 = vmatpush1.msra.mxu0 %v487
        %515 = vmatprep.subr.mxu0 0.0
        %516 = vmatpush1.msra.mxu0 %v488
        %517 = vmatprep.subr.mxu0 0.0
        %518 = vmatpush1.msra.mxu0 %v489
        %519 = vmatprep.subr.mxu0 0.0
        %520 = vmatpush1.msra.mxu0 %v490
        %521 = vmatprep.subr.mxu0 0.0
        %522 = vmatpush1.msra.mxu0 %v491
        %523 = vmatprep.subr.mxu0 0.0
        %524 = vmatpush1.msra.mxu0 %v492
        %525 = vmatprep.subr.mxu0 0.0
        %526 = vmatpush1.msra.mxu0 %v493
        %527 = vmatprep.subr.mxu0 0.0
        %528 = vmatpush1.msra.mxu0 0.0
        %529 = vmatprep.subr.mxu0 0.0
        %530 = vmatpush1.msra.mxu0 0.0
        %531 = vmatprep.subr.mxu0 0.0
        %532 = vmatpush1.msra.mxu0 0.0
        %533 = vmatprep.subr.mxu0 0.0
        %534 = vmatpush1.msra.mxu0 0.0
        %535 = vmatprep.subr.mxu0 0.0
        %536 = vmatpush1.msra.mxu0 0.0
        %537 = vmatprep.subr.mxu0 0.0
        %538 = vmatpush1.msra.mxu0 0.0
        %539 = vmatprep.subr.mxu0 0.0
        %540 = vmatpush1.msra.mxu0 0.0
        %541 = vmatprep.subr.mxu0 0.0
        %542 = vmatpush1.msra.mxu0 0.0
        %543 = vmatprep.subr.mxu0 0.0
        %544 = vmatpush1.msra.mxu0 0.0
        %545 = vmatprep.subr.mxu0 0.0
        %546 = vmatpush1.msra.mxu0 0.0
        %547 = vmatprep.subr.mxu0 0.0
        %548 = vmatpush1.msra.mxu0 0.0
        %549 = vmatprep.subr.mxu0 0.0
        %550 = vmatpush1.msra.mxu0 0.0
        %551 = vmatprep.subr.mxu0 0.0
        %552 = vmatpush1.msra.mxu0 0.0
        %553 = vmatprep.subr.mxu0 0.0
        %554 = vmatpush1.msra.mxu0 0.0
        %555 = vmatprep.subr.mxu0 0.0
        %556 = vmatpush1.msra.mxu0 0.0
        %557 = vmatprep.subr.mxu0 0.0
        %558 = vmatpush1.msra.mxu0 0.0
        %559 = vmatprep.mubr.f32.mxu0 0.0
        %560 = vmatmul.mubr.f32.gmra.mrb[0].mxu0 %v475
        %v561 = vpop.f32.mrb[0].mxu0
        %v562 = vadd.f32 %v494, %v561
        %v563 = vpop.f32.mrb[0].mxu0
        %564 = vdwg.mxu0
        %565 = vst [vmem:[%s258] sm:$0x1] %v562
        %s566 = sand.u32 %s160, 1
        %s567 = scalar_lea.sflag [#allocation4], %s566
        %s568 = sand.u32 %s160, 1
        %s569 = scalar_lea.vmem [#allocation5], %s568
        // Predicated region
        $region49: #{tpu_custom_call.1} parent=43 // pred_check
          %p570 = pneg %p170
        $region50: #{tpu_custom_call.1} parent=43 // pred_check_branch
          %572 = sbr.rel (%p570) target = $region52
        $region51: #{tpu_custom_call.1} parent=43 // pred_region
          %s574 = ssub.s32 16, 16
          %575 = vsyncadd %s567, %s574
          %s576 = smul.addr %s21, 16
          %s577 = scalar_lea.hbm %s6, %s576
          %s579 = sshll.u32 %s569, 4
          %s580 = int_to_ptr.vmem [resolvable:$true] %s579
          %582 = dma.vmem_to_hbm [thread:$0]  %s580, 16, %s577, %s567
        $region52: #{tpu_custom_call.1} parent=43 // pred_fallthru
          _
      $region44: #{tpu_custom_call.1} parent=5 // pred_fallthru
        _
      %p583 = scmp.le.s32.totalorder 2, %s16
      // Predicated region
      $region53: #{tpu_custom_call.1} parent=5 // pred_check
        %p584 = pneg %p583
      $region54: #{tpu_custom_call.1} parent=5 // pred_check_branch
        %586 = sbr.rel (%p584) target = $region56
      $region55: #{tpu_custom_call.1} parent=5 // pred_region
        %s587 = ssub.s32 %s16, 2
        // Predicated region
        $region57: #{tpu_custom_call.1} parent=55 // pred_check
          %p588 = pneg %p176
        $region58: #{tpu_custom_call.1} parent=55 // pred_check_branch
          %590 = sbr.rel (%p588) target = $region60
        $region59: #{tpu_custom_call.1} parent=55 // pred_region
          %s591 = sand.u32 %s161, 1
          %s592 = scalar_lea.sflag [#allocation4], %s591
          %s593 = sand.u32 %s161, 1
          %s594 = scalar_lea.vmem [#allocation5], %s593
          %595 = dma.done %s592, 16
        $region60: #{tpu_custom_call.1} parent=55 // pred_fallthru
          _
      $region56: #{tpu_custom_call.1} parent=5 // pred_fallthru
        _
    $region6: #{tpu_custom_call.1} parent=1 // loop_footer
      %s20 = sadd.s32 1, %s16
    $region7: #{tpu_custom_call.1} parent=1 // loop_footer_branch
      %15 = sbr.rel target = $region3
    $region8: #{tpu_custom_call.1} parent=1 // loop_exit
      _
    %596 = vsyncpa [#allocation3], 1
    %s597 = scalar_lea.sflag [#allocation3], 1
    %598 = vsyncpa %s597, 1
    %599 = vsyncpa [#allocation4], 1
    %s600 = scalar_lea.sflag [#allocation4], 1
    %601 = vsyncpa %s600, 1

</llo_original>
